<compile_context>
chip_gen: v5e
topology: v5e:2x2
jax: 0.10.0
libtpu: 0.0.40
codegen_flags: <defaults>
</compile_context>

<pallas_src>
import math

import jax
import jax.numpy as jnp
from jax.experimental import pallas as pl
from jax.experimental.pallas import tpu as pltpu

_LANE = 128
_VMEM_OUT_BUDGET = 16 * 1024 * 1024   # double-buffered output tile budget (v7x-safe)
_VMEM_LIMIT = 32 * 1024 * 1024        # explicit scoped-VMEM limit
_MAX_PATTERN_BYTES = 512 * 1024       # keep the (1, W) bias pattern small


def _leaf_param_kernel(pattern_ref, o_ref):
    # pattern_ref: (1, W) VMEM tile (constant index_map -> DMA'd once).
    # o_ref: (block_rows, W) VMEM tile.
    # The sublane replicate co-issues on VALU/XLU slots; the vector-store slot
    # is the bottleneck, so the broadcast is effectively free filler.
    o_ref[...] = jnp.broadcast_to(pattern_ref[...], o_ref.shape)


def leaf_parameter_forward(bias, inputs):
    """Broadcast `bias` (F,) to inputs.shape[:-1] + (F,) via a Pallas kernel."""
    (in_features,) = bias.shape
    batch_shape = inputs.shape[:-1]
    out_shape = batch_shape + (in_features,)

    B = math.prod(batch_shape) if batch_shape else 1
    if B == 0:
        return jnp.zeros(out_shape, bias.dtype)

    itemsize = jnp.dtype(bias.dtype).itemsize
    packing = 8 * max(1, 4 // itemsize)      # min sublanes: 8 f32, 16 bf16, 32 int8
    total = B * in_features

    # Lane-dense re-layout: rows of width W (multiple of both 128 and F) so the
    # per-row pattern is identical and stores are unmasked.  Only used when the
    # flattened output divides cleanly (then the final reshape is free); when
    # F is already a multiple of 128 the plain (B, F) layout is lane-dense.
    W = (_LANE * in_features) // math.gcd(_LANE, in_features)   # lcm(128, F)
    lane_dense = (
        in_features % _LANE != 0
        and total % W == 0
        and W * itemsize <= _MAX_PATTERN_BYTES
    )

    if lane_dense:
        rows, width = total // W, W
        pattern = jnp.tile(bias, W // in_features).reshape(1, W)
    else:
        rows, width = B, in_features
        pattern = bias.reshape(1, in_features)

    # Largest batch tile whose double-buffered output stays inside the budget.
    max_rows = _VMEM_OUT_BUDGET // (2 * width * itemsize)
    block_rows = max(packing, (max_rows // packing) * packing)
    if block_rows >= rows:
        block_rows = rows                    # single tile / full-extent block
    grid = (pl.cdiv(rows, block_rows),)      # ragged last block handled by Pallas

    out_flat = pl.pallas_call(
        _leaf_param_kernel,
        out_shape=jax.ShapeDtypeStruct((rows, width), bias.dtype),
        grid_spec=pltpu.PrefetchScalarGridSpec(
            num_scalar_prefetch=0,
            grid=grid,
            in_specs=[pl.BlockSpec((1, width), lambda i: (0, 0))],
            out_specs=pl.BlockSpec((block_rows, width), lambda i: (i, 0)),
        ),
        compiler_params=pltpu.CompilerParams(
            dimension_semantics=("parallel",),   # megacore-shards the grid on v7x
            vmem_limit_bytes=_VMEM_LIMIT,
        ),
    )(pattern)

    return out_flat.reshape(out_shape)


if __name__ == "__main__":
    in_features = 32
    key = jax.random.PRNGKey(0)
    kb, kx = jax.random.split(key)

    # nn.Parameter(torch.zeros(in_features)) is zero-initialized; use random
    # values here so the broadcast semantics are actually exercised.
    bias = jax.random.normal(kb, (in_features,), dtype=jnp.float32)
    # inputs: (batch=2, seq=8, in_features=32); only the leading dims matter.
    inputs = jax.random.normal(kx, (2, 8, in_features), dtype=jnp.float32)

    out = leaf_parameter_forward(bias, inputs)
    out = jax.block_until_ready(out)

    # Reference: torch's bias.expand(inputs.shape[:-1] + (-1,))
    ref = jnp.broadcast_to(bias, inputs.shape[:-1] + (in_features,))
    assert out.shape == inputs.shape[:-1] + (in_features,)
    assert out.dtype == bias.dtype
    assert jnp.array_equal(out, ref)

    # Also check the zero-initialized-parameter case from the module spec.
    out0 = jax.block_until_ready(
        leaf_parameter_forward(jnp.zeros((in_features,), jnp.float32), inputs)
    )
    assert jnp.array_equal(out0, jnp.zeros_like(ref))

    print("KERNEL_OK")
</pallas_src>

<mosaic_0001>
module attributes {stable_mosaic.version = 11 : i64} {
  func.func @_leaf_param_kernel(%arg0: i32, %arg1: memref<1x128xf32, #tpu.memory_space<vmem>>, %arg2: memref<4x128xf32, #tpu.memory_space<vmem>>) attributes {dimension_semantics = [#tpu.dimension_semantics<parallel>], iteration_bounds = array<i64: 1>, scalar_prefetch = 0 : i64, scratch_operands = 0 : i64, tpu.core_type = #tpu.core_type<tc>, window_params = [{pipeline_mode = #tpu.pipeline_mode<synchronous>, transform_indices = @transform_0, window_bounds = array<i64: 1, 128>}, {transform_indices = @transform_1, window_bounds = array<i64: 4, 128>}]} {
    %c0 = arith.constant 0 : index
    %c0_0 = arith.constant 0 : index
    %0 = vector.load %arg1[%c0, %c0_0] : memref<1x128xf32, #tpu.memory_space<vmem>>, vector<1x128xf32>
    %1 = vector.shape_cast %0 : vector<1x128xf32> to vector<1x128xf32>
    %2 = vector.broadcast %1 : vector<1x128xf32> to vector<4x128xf32>
    %c0_1 = arith.constant 0 : index
    %c0_2 = arith.constant 0 : index
    %3 = vector.load %arg2[%c0_1, %c0_2] : memref<4x128xf32, #tpu.memory_space<vmem>>, vector<4x128xf32>
    tpu.vector_store %arg2[%c0_1, %c0_2], %2 {strides = array<i32>} : memref<4x128xf32, #tpu.memory_space<vmem>>, vector<4x128xf32>,
    return
  }
  func.func @transform_0(%arg0: i32) -> (i32, i32) {
    %c0_i32 = arith.constant 0 : i32
    %c0_i32_0 = arith.constant 0 : i32
    %c0_i32_1 = arith.constant 0 : i32
    return %c0_i32, %c0_i32_0 : i32, i32
  }
  func.func @transform_1(%arg0: i32) -> (i32, i32) {
    %c0_i32 = arith.constant 0 : i32
    %c0_i32_0 = arith.constant 0 : i32
    return %arg0, %c0_i32 : i32, i32
  }
}

</mosaic_0001>

<llo_original>
// kernel: tpu_custom_call.1
$region0: #{tpu_custom_call.1}
  #allocation0 [shape = 'u32[]', space=smem, size = 0x4, offset = 0x4, fixed_abs, tag = 'smem constant byte address 0x4 - core index']
  #allocation1 [shape = 'u32[72,128]{1,0:T(1,128)}', space=vmem, size = 0x9000, scoped, tag = 'internal scratch']
  %s0 = inlined_call_operand.hbm [shape: f32[1,128], index: 0, kind: input, shape index: {}]
  %s1 = inlined_call_operand.hbm [shape: f32[4,128], index: 1, kind: output, shape index: {}]
  %s2 = sld [smem:[#allocation0]]
  $region18: #{tpu_custom_call.1} parent=0
    _
  %s4 = ssub.s32 1, %s2
  %s5 = scalar_select 0, %s4, %s2
  $region1: #{tpu_custom_call.1} parent=0
    #allocation2 [shape = 'u8[512]{0}', space=vmem, size = 0x400, scoped, tag = 'input window, operand 0, single buffered']
    #allocation3 [shape = 's32[1]{0}', space=sflag, size = 0x4, scoped, tag = 'scoped memory for tpu_custom_call.1']
    #allocation4 [shape = 's32[1]{0}', space=sflag, size = 0x4, scoped, tag = 'scoped memory for tpu_custom_call.1']
    #allocation5 [shape = 'u8[2048]{0}', space=vmem, size = 0x800, scoped, tag = 'output window, operand 0, single buffered']
    %6 = vsyncpa [#allocation3], 0
    %7 = vsyncpa [#allocation4], 0
    // Predicated region
    $region2: #{tpu_custom_call.1} parent=1 // pred_check
      _
    $region3: #{tpu_custom_call.1} parent=1 // pred_check_branch
      %9 = sbr.rel (0) target = $region5
    $region4: #{tpu_custom_call.1} parent=1 // pred_region
      %11 = vsyncadd [#allocation3], 0
      %s13 = sshll.u32 %s0, 4
      %s14 = int_to_ptr.hbm [resolvable:$true] %s13
      %s15 = sshll.u32 [#allocation2], 4
      %s16 = int_to_ptr.vmem [resolvable:$true] %s15
      %18 = dma.hbm_to_vmem [thread:$0]  %s14, 16, %s16, [#allocation3]
    $region5: #{tpu_custom_call.1} parent=1 // pred_fallthru
      _
    // Predicated region
    $region6: #{tpu_custom_call.1} parent=1 // pred_check
      _
    $region7: #{tpu_custom_call.1} parent=1 // pred_check_branch
      %20 = sbr.rel (0) target = $region9
    $region8: #{tpu_custom_call.1} parent=1 // pred_region
      %22 = dma.done [#allocation3], 16
    $region9: #{tpu_custom_call.1} parent=1 // pred_fallthru
      _
    %v23 = vld [vmem:[#allocation2] sm:$0x1]
    %v25 = vperm.slane %v23, 0
    %27 = vst [vmem:[#allocation5] sm:$0xf] %v25
    // Predicated region
    $region10: #{tpu_custom_call.1} parent=1 // pred_check
      _
    $region11: #{tpu_custom_call.1} parent=1 // pred_check_branch
      %29 = sbr.rel (0) target = $region13
    $region12: #{tpu_custom_call.1} parent=1 // pred_region
      %31 = vsyncadd [#allocation4], 0
      %s33 = sshll.u32 [#allocation5], 4
      %s34 = int_to_ptr.vmem [resolvable:$true] %s33
      %s35 = sshll.u32 %s1, 4
      %s36 = int_to_ptr.hbm [resolvable:$true] %s35
      %38 = dma.vmem_to_hbm [thread:$0]  %s34, 64, %s36, [#allocation4]
    $region13: #{tpu_custom_call.1} parent=1 // pred_fallthru
      _
    // Predicated region
    $region14: #{tpu_custom_call.1} parent=1 // pred_check
      _
    $region15: #{tpu_custom_call.1} parent=1 // pred_check_branch
      %40 = sbr.rel (0) target = $region17
    $region16: #{tpu_custom_call.1} parent=1 // pred_region
      %42 = dma.done [#allocation4], 64
    $region17: #{tpu_custom_call.1} parent=1 // pred_fallthru
      _
    %43 = vsyncpa [#allocation3], 1
    %44 = vsyncpa [#allocation4], 1

</llo_original>
